<compile_context>
chip_gen: v7x
topology: tpu7x:2x2x1
jax: 0.10.0
libtpu: 0.0.40
codegen_flags: <defaults>
</compile_context>

<pallas_src>
import math
import jax
import jax.numpy as jnp
from jax.experimental import pallas as pl
from jax.experimental.pallas import tpu as pltpu

LANE = 128


def _round_up(x, m):
    return (x + m - 1) // m * m


# ----------------------------- Pallas kernel -----------------------------
def deepfm_kernel(feat_ref, first_ref, fsum_ref, w0_ref, b0_ref, w1_ref,
                  b1_ref, w2_ref, b2_ref, out_ref):
    # feat_ref:  [TB, Kp]  flattened field embeddings, zero-padded to Kp lanes
    # first_ref: [TB, F]   first-order terms (sparse 1-d embs ++ dense*w_one)
    # fsum_ref:  [TB, D]   per-dim field sums (sum over the F fields)
    # w0/b0, w1/b1:        hidden MLP layers (w0 pad rows are zero)
    # w2_ref:    [1, H1]   final layer as a row vector (VPU reduction)
    # b2_ref:    [1, 1]    final bias (SMEM scalar)
    # out_ref:   [TB, 128] lane-dense output slab (prob broadcast across lanes)
    x = feat_ref[...]                                            # [TB, Kp]

    # --- FM second order: 0.5 * (sum_d (sum_f e)^2 - sum_{f,d} e^2) ---
    s = fsum_ref[...]                                            # [TB, D]
    y_second = 0.5 * (jnp.sum(s * s, axis=1, keepdims=True)
                      - jnp.sum(x * x, axis=1, keepdims=True))   # pad lanes are 0

    # --- FM first order ---
    y_first = jnp.sum(first_ref[...], axis=1, keepdims=True)

    # --- DNN: Linear -> ReLU -> Linear -> ReLU -> row-vector Linear ---
    h = jnp.dot(x, w0_ref[...], preferred_element_type=jnp.float32) + b0_ref[...]
    h = jnp.maximum(h, 0.0)
    h = jnp.dot(h, w1_ref[...], preferred_element_type=jnp.float32) + b1_ref[...]
    h = jnp.maximum(h, 0.0)
    y_dnn = jnp.sum(h * w2_ref[...], axis=1, keepdims=True) + b2_ref[0, 0]

    logits = y_first + y_second + y_dnn
    prob = 1.0 / (1.0 + jnp.exp(-logits))                        # exp -> EUP
    out_ref[...] = jnp.broadcast_to(prob, out_ref.shape)         # unmasked store


def deepfm_pallas(feat_pad, first_in, fsum, w0, b0, w1, b1, w2_row, b2, *, tb):
    Bp, Kp = feat_pad.shape
    F1 = first_in.shape[1]
    D = fsum.shape[1]
    H0 = w0.shape[1]
    H1 = w1.shape[1]
    grid = (Bp // tb,)

    def batch(cols):
        return pl.BlockSpec((tb, cols), lambda i: (i, 0))

    def const(r, c):
        return pl.BlockSpec((r, c), lambda i: (0, 0))

    flops = 2 * Bp * (Kp * H0 + H0 * H1 + H1) + 8 * Bp * Kp
    bytes_accessed = 4 * (feat_pad.size + first_in.size + fsum.size
                          + w0.size + w1.size + Bp * LANE)

    return pl.pallas_call(
        deepfm_kernel,
        out_shape=jax.ShapeDtypeStruct((Bp, LANE), jnp.float32),
        grid_spec=pltpu.PrefetchScalarGridSpec(
            num_scalar_prefetch=0,
            grid=grid,
            in_specs=[
                batch(Kp),                      # feat_pad   (batch-tiled)
                batch(F1),                      # first_in   (batch-tiled)
                batch(D),                       # fsum       (batch-tiled)
                const(Kp, H0),                  # w0  (resident across steps)
                const(1, H0),                   # b0
                const(H0, H1),                  # w1
                const(1, H1),                   # b1
                const(1, H1),                   # w2 row vector
                pl.BlockSpec(memory_space=pltpu.MemorySpace.SMEM),  # b2 scalar
            ],
            out_specs=batch(LANE),
        ),
        compiler_params=pltpu.CompilerParams(
            dimension_semantics=("parallel",),
        ),
        cost_estimate=pl.CostEstimate(
            flops=flops, transcendentals=Bp, bytes_accessed=bytes_accessed),
    )(feat_pad, first_in, fsum, w0, b0, w1, b1, w2_row, b2)


# ----------------------------- parameter setup -----------------------------
def make_params(key, sparse_feature_number, sparse_feature_dim,
                dense_feature_dim, num_field, layer_sizes):
    ks = jax.random.split(key, 16)
    init_std = 0.1 / math.sqrt(float(sparse_feature_dim))

    # FM embeddings (padding_idx=0 => row 0 zeroed)
    emb_one = init_std * jax.random.truncated_normal(
        ks[0], -2.0, 2.0, (sparse_feature_number, 1), jnp.float32)
    emb_one = emb_one.at[0].set(0.0)
    emb = init_std * jax.random.truncated_normal(
        ks[1], -2.0, 2.0, (sparse_feature_number, sparse_feature_dim), jnp.float32)
    emb = emb.at[0].set(0.0)

    dense_w_one = init_std * jax.random.truncated_normal(
        ks[2], -2.0, 2.0, (dense_feature_dim,), jnp.float32)
    dense_w = init_std * jax.random.truncated_normal(
        ks[3], -2.0, 2.0, (1, dense_feature_dim, sparse_feature_dim), jnp.float32)

    # DNN MLP: sizes = [F*D] + layer_sizes + [1]
    sizes = [sparse_feature_dim * num_field] + list(layer_sizes) + [1]
    mlp = []
    for i in range(len(sizes) - 1):
        std = 1.0 / math.sqrt(sizes[i])
        W = std * jax.random.normal(ks[4 + i], (sizes[i], sizes[i + 1]), jnp.float32)
        b = jnp.zeros((1, sizes[i + 1]), jnp.float32)
        mlp.append((W, b))
    return dict(emb_one=emb_one, emb=emb, dense_w_one=dense_w_one,
                dense_w=dense_w, mlp=mlp)


# ----------------------------- forward (glue + kernel) -----------------------------
def deepfm_forward(params, sparse_inputs, dense_inputs, *, tb=None):
    # sparse_inputs: list of SNF arrays of shape [B, 1] (int32)
    # dense_inputs:  [B, DD] float32
    sparse_concat = jnp.concatenate(sparse_inputs, axis=1)               # [B, SNF]
    B = dense_inputs.shape[0]

    # embedding lookups (data-dependent gathers stay in XLA glue)
    sparse_emb_one = jnp.take(params["emb_one"], sparse_concat, axis=0)  # [B, SNF, 1]
    sparse_emb = jnp.take(params["emb"], sparse_concat, axis=0)          # [B, SNF, D]

    dense_emb = dense_inputs[:, :, None] * params["dense_w"]             # [B, DD, D]
    feat = jnp.concatenate([sparse_emb, dense_emb], axis=1)              # [B, F, D]
    _, F, D = feat.shape

    # per-dim field sums (exact f32; fuses with the gather/concat producer)
    fsum = jnp.sum(feat, axis=1)                                         # [B, D]

    # first-order terms packed into one row per example
    first_in = jnp.concatenate(
        [sparse_emb_one[:, :, 0],
         dense_inputs * params["dense_w_one"][None, :]], axis=1)         # [B, F]

    # flatten + pad the feature axis to a multiple of 128 lanes
    K = F * D
    Kp = _round_up(K, LANE)
    feat_flat = feat.reshape(B, K)
    feat_pad = jnp.pad(feat_flat, ((0, 0), (0, Kp - K)))                 # [B, Kp]

    # batch tile: >=8 sublanes, cap at 512 rows (fits v7x's 64 MiB VMEM easily)
    if tb is None:
        tb = min(512, _round_up(B, 8))
    Bp = _round_up(B, tb)
    pad_b = Bp - B
    if pad_b:
        feat_pad = jnp.pad(feat_pad, ((0, pad_b), (0, 0)))
        first_in = jnp.pad(first_in, ((0, pad_b), (0, 0)))
        fsum = jnp.pad(fsum, ((0, pad_b), (0, 0)))

    (w0, b0), (w1, b1), (w2, b2) = params["mlp"]
    w0_pad = jnp.pad(w0, ((0, Kp - K), (0, 0)))     # zero rows for pad lanes
    w2_row = w2.T                                   # [1, H1]
    b2_s = b2.reshape(1, 1)

    out = deepfm_pallas(feat_pad, first_in, fsum, w0_pad, b0, w1, b1,
                        w2_row, b2_s, tb=tb)
    return out[:B, 0:1]


# ----------------------------- pure-JAX reference -----------------------------
def deepfm_reference(params, sparse_inputs, dense_inputs):
    sparse_concat = jnp.concatenate(sparse_inputs, axis=1)
    sparse_emb_one = jnp.take(params["emb_one"], sparse_concat, axis=0)
    dense_emb_one = (dense_inputs * params["dense_w_one"])[:, :, None]
    y_first = jnp.sum(sparse_emb_one, 1) + jnp.sum(dense_emb_one, 1)

    sparse_emb = jnp.take(params["emb"], sparse_concat, axis=0)
    dense_emb = dense_inputs[:, :, None] * params["dense_w"]
    feat = jnp.concatenate([sparse_emb, dense_emb], axis=1)
    summed = jnp.sum(feat, 1)
    y_second = 0.5 * jnp.sum(summed * summed - jnp.sum(feat * feat, 1), 1, keepdims=True)

    B = feat.shape[0]
    y = feat.reshape(B, -1)
    for i, (W, b) in enumerate(params["mlp"]):
        y = y @ W + b
        if i < len(params["mlp"]) - 1:
            y = jnp.maximum(y, 0.0)
    logits = y_first + y_second + y
    return 1.0 / (1.0 + jnp.exp(-logits))


# ----------------------------- main -----------------------------
if __name__ == "__main__":
    # Small Criteo-like config
    sparse_feature_number = 1000
    sparse_feature_dim = 9
    dense_feature_dim = 13
    sparse_num_field = 26
    num_field = sparse_num_field + dense_feature_dim   # 39
    layer_sizes = [64, 32]
    B = 2

    key = jax.random.PRNGKey(0)
    kp, ki, kd = jax.random.split(key, 3)
    params = make_params(kp, sparse_feature_number, sparse_feature_dim,
                         dense_feature_dim, num_field, layer_sizes)

    idx_keys = jax.random.split(ki, sparse_num_field)
    sparse_inputs = [jax.random.randint(idx_keys[i], (B, 1), 0,
                                        sparse_feature_number, dtype=jnp.int32)
                     for i in range(sparse_num_field)]
    dense_inputs = jax.random.uniform(kd, (B, dense_feature_dim), jnp.float32)

    out = deepfm_forward(params, sparse_inputs, dense_inputs)
    out = jax.block_until_ready(out)

    ref = deepfm_reference(params, sparse_inputs, dense_inputs)
    assert out.shape == (B, 1)
    assert jnp.allclose(out, ref, atol=3e-5, rtol=3e-5), (out, ref)
    print("KERNEL_OK")
</pallas_src>

<mosaic_0001>
module attributes {stable_mosaic.version = 11 : i64} {
  func.func @deepfm_kernel(%arg0: i32, %arg1: memref<8x384xf32, #tpu.memory_space<vmem>>, %arg2: memref<8x39xf32, #tpu.memory_space<vmem>>, %arg3: memref<8x9xf32, #tpu.memory_space<vmem>>, %arg4: memref<384x64xf32, #tpu.memory_space<vmem>>, %arg5: memref<1x64xf32, #tpu.memory_space<vmem>>, %arg6: memref<64x32xf32, #tpu.memory_space<vmem>>, %arg7: memref<1x32xf32, #tpu.memory_space<vmem>>, %arg8: memref<1x32xf32, #tpu.memory_space<vmem>>, %arg9: memref<1x1xf32, #tpu.memory_space<smem>>, %arg10: memref<8x128xf32, #tpu.memory_space<vmem>>) attributes {dimension_semantics = [#tpu.dimension_semantics<parallel>], iteration_bounds = array<i64: 1>, scalar_prefetch = 0 : i64, scratch_operands = 0 : i64, tpu.core_type = #tpu.core_type<tc>, window_params = [{transform_indices = @transform_0, window_bounds = array<i64: 8, 384>}, {transform_indices = @transform_1, window_bounds = array<i64: 8, 39>}, {transform_indices = @transform_2, window_bounds = array<i64: 8, 9>}, {pipeline_mode = #tpu.pipeline_mode<synchronous>, transform_indices = @transform_3, window_bounds = array<i64: 384, 64>}, {pipeline_mode = #tpu.pipeline_mode<synchronous>, transform_indices = @transform_4, window_bounds = array<i64: 1, 64>}, {pipeline_mode = #tpu.pipeline_mode<synchronous>, transform_indices = @transform_5, window_bounds = array<i64: 64, 32>}, {pipeline_mode = #tpu.pipeline_mode<synchronous>, transform_indices = @transform_6, window_bounds = array<i64: 1, 32>}, {pipeline_mode = #tpu.pipeline_mode<synchronous>, transform_indices = @transform_7, window_bounds = array<i64: 1, 32>}, {transform_indices = @transform_8, window_bounds = array<i64: 1, 1>}, {transform_indices = @transform_9, window_bounds = array<i64: 8, 128>}]} {
    %c0 = arith.constant 0 : index
    %c0_0 = arith.constant 0 : index
    %0 = vector.load %arg1[%c0, %c0_0] : memref<8x384xf32, #tpu.memory_space<vmem>>, vector<8x384xf32>
    %c0_1 = arith.constant 0 : index
    %c0_2 = arith.constant 0 : index
    %1 = vector.load %arg3[%c0_1, %c0_2] : memref<8x9xf32, #tpu.memory_space<vmem>>, vector<8x9xf32>
    %2 = arith.mulf %1, %1 : vector<8x9xf32>
    %cst = arith.constant dense<0.000000e+00> : vector<8xf32>
    %3 = vector.multi_reduction <add>, %2, %cst [1] : vector<8x9xf32> to vector<8xf32>
    %4 = vector.shape_cast %3 : vector<8xf32> to vector<8x1xf32>
    %5 = arith.mulf %0, %0 : vector<8x384xf32>
    %cst_3 = arith.constant dense<0.000000e+00> : vector<8xf32>
    %6 = vector.multi_reduction <add>, %5, %cst_3 [1] : vector<8x384xf32> to vector<8xf32>
    %7 = vector.shape_cast %6 : vector<8xf32> to vector<8x1xf32>
    %8 = arith.subf %4, %7 : vector<8x1xf32>
    %cst_4 = arith.constant 5.000000e-01 : f32
    %9 = vector.broadcast %cst_4 : f32 to vector<8x1xf32>
    %10 = arith.mulf %9, %8 : vector<8x1xf32>
    %c0_5 = arith.constant 0 : index
    %c0_6 = arith.constant 0 : index
    %11 = vector.load %arg2[%c0_5, %c0_6] : memref<8x39xf32, #tpu.memory_space<vmem>>, vector<8x39xf32>
    %cst_7 = arith.constant dense<0.000000e+00> : vector<8xf32>
    %12 = vector.multi_reduction <add>, %11, %cst_7 [1] : vector<8x39xf32> to vector<8xf32>
    %13 = vector.shape_cast %12 : vector<8xf32> to vector<8x1xf32>
    %c0_8 = arith.constant 0 : index
    %c0_9 = arith.constant 0 : index
    %14 = vector.load %arg4[%c0_8, %c0_9] : memref<384x64xf32, #tpu.memory_space<vmem>>, vector<384x64xf32>
    %cst_10 = arith.constant dense<0.000000e+00> : vector<8x64xf32>
    %15 = tpu.matmul %0, %14, %cst_10 {dimension_numbers = #tpu.dot_dimension_numbers<[1], [0], [0], [1], [0, 0, 1, 1], [], []>} : vector<8x384xf32>, vector<384x64xf32>, vector<8x64xf32> -> vector<8x64xf32>
    %c0_11 = arith.constant 0 : index
    %c0_12 = arith.constant 0 : index
    %16 = vector.load %arg5[%c0_11, %c0_12] : memref<1x64xf32, #tpu.memory_space<vmem>>, vector<1x64xf32>
    %17 = vector.broadcast %16 : vector<1x64xf32> to vector<8x64xf32>
    %18 = arith.addf %15, %17 : vector<8x64xf32>
    %cst_13 = arith.constant 0.000000e+00 : f32
    %19 = vector.broadcast %cst_13 : f32 to vector<8x64xf32>
    %20 = arith.maximumf %18, %19 : vector<8x64xf32>
    %c0_14 = arith.constant 0 : index
    %c0_15 = arith.constant 0 : index
    %21 = vector.load %arg6[%c0_14, %c0_15] : memref<64x32xf32, #tpu.memory_space<vmem>>, vector<64x32xf32>
    %cst_16 = arith.constant dense<0.000000e+00> : vector<8x32xf32>
    %22 = tpu.matmul %20, %21, %cst_16 {dimension_numbers = #tpu.dot_dimension_numbers<[1], [0], [0], [1], [0, 0, 1, 1], [], []>} : vector<8x64xf32>, vector<64x32xf32>, vector<8x32xf32> -> vector<8x32xf32>
    %c0_17 = arith.constant 0 : index
    %c0_18 = arith.constant 0 : index
    %23 = vector.load %arg7[%c0_17, %c0_18] : memref<1x32xf32, #tpu.memory_space<vmem>>, vector<1x32xf32>
    %24 = vector.broadcast %23 : vector<1x32xf32> to vector<8x32xf32>
    %25 = arith.addf %22, %24 : vector<8x32xf32>
    %cst_19 = arith.constant 0.000000e+00 : f32
    %26 = vector.broadcast %cst_19 : f32 to vector<8x32xf32>
    %27 = arith.maximumf %25, %26 : vector<8x32xf32>
    %c0_20 = arith.constant 0 : index
    %c0_21 = arith.constant 0 : index
    %28 = vector.load %arg8[%c0_20, %c0_21] : memref<1x32xf32, #tpu.memory_space<vmem>>, vector<1x32xf32>
    %29 = vector.broadcast %28 : vector<1x32xf32> to vector<8x32xf32>
    %30 = arith.mulf %27, %29 : vector<8x32xf32>
    %cst_22 = arith.constant dense<0.000000e+00> : vector<8xf32>
    %31 = vector.multi_reduction <add>, %30, %cst_22 [1] : vector<8x32xf32> to vector<8xf32>
    %32 = vector.shape_cast %31 : vector<8xf32> to vector<8x1xf32>
    %c0_23 = arith.constant 0 : index
    %c0_24 = arith.constant 0 : index
    %33 = memref.load %arg9[%c0_23, %c0_24] : memref<1x1xf32, #tpu.memory_space<smem>>
    %34 = vector.broadcast %33 : f32 to vector<8x1xf32>
    %35 = arith.addf %32, %34 : vector<8x1xf32>
    %36 = arith.addf %13, %10 : vector<8x1xf32>
    %37 = arith.addf %36, %35 : vector<8x1xf32>
    %cst_25 = arith.constant 0.000000e+00 : f32
    %38 = vector.broadcast %cst_25 : f32 to vector<8x1xf32>
    %39 = arith.subf %38, %37 : vector<8x1xf32>
    %40 = math.exp %39 : vector<8x1xf32>
    %cst_26 = arith.constant 1.000000e+00 : f32
    %41 = vector.broadcast %cst_26 : f32 to vector<8x1xf32>
    %42 = arith.addf %41, %40 : vector<8x1xf32>
    %cst_27 = arith.constant 1.000000e+00 : f32
    %43 = vector.broadcast %cst_27 : f32 to vector<8x1xf32>
    %44 = arith.divf %43, %42 : vector<8x1xf32>
    %45 = vector.shape_cast %44 : vector<8x1xf32> to vector<8x1xf32>
    %46 = vector.broadcast %45 : vector<8x1xf32> to vector<8x128xf32>
    %c0_28 = arith.constant 0 : index
    %c0_29 = arith.constant 0 : index
    %47 = vector.load %arg10[%c0_28, %c0_29] : memref<8x128xf32, #tpu.memory_space<vmem>>, vector<8x128xf32>
    tpu.vector_store %arg10[%c0_28, %c0_29], %46 {strides = array<i32>} : memref<8x128xf32, #tpu.memory_space<vmem>>, vector<8x128xf32>,
    return
  }
  func.func @transform_0(%arg0: i32) -> (i32, i32) {
    %c0_i32 = arith.constant 0 : i32
    %c0_i32_0 = arith.constant 0 : i32
    return %arg0, %c0_i32 : i32, i32
  }
  func.func @transform_1(%arg0: i32) -> (i32, i32) {
    %c0_i32 = arith.constant 0 : i32
    %c0_i32_0 = arith.constant 0 : i32
    return %arg0, %c0_i32 : i32, i32
  }
  func.func @transform_2(%arg0: i32) -> (i32, i32) {
    %c0_i32 = arith.constant 0 : i32
    %c0_i32_0 = arith.constant 0 : i32
    return %arg0, %c0_i32 : i32, i32
  }
  func.func @transform_3(%arg0: i32) -> (i32, i32) {
    %c0_i32 = arith.constant 0 : i32
    %c0_i32_0 = arith.constant 0 : i32
    %c0_i32_1 = arith.constant 0 : i32
    return %c0_i32, %c0_i32_0 : i32, i32
  }
  func.func @transform_4(%arg0: i32) -> (i32, i32) {
    %c0_i32 = arith.constant 0 : i32
    %c0_i32_0 = arith.constant 0 : i32
    %c0_i32_1 = arith.constant 0 : i32
    return %c0_i32, %c0_i32_0 : i32, i32
  }
  func.func @transform_5(%arg0: i32) -> (i32, i32) {
    %c0_i32 = arith.constant 0 : i32
    %c0_i32_0 = arith.constant 0 : i32
    %c0_i32_1 = arith.constant 0 : i32
    return %c0_i32, %c0_i32_0 : i32, i32
  }
  func.func @transform_6(%arg0: i32) -> (i32, i32) {
    %c0_i32 = arith.constant 0 : i32
    %c0_i32_0 = arith.constant 0 : i32
    %c0_i32_1 = arith.constant 0 : i32
    return %c0_i32, %c0_i32_0 : i32, i32
  }
  func.func @transform_7(%arg0: i32) -> (i32, i32) {
    %c0_i32 = arith.constant 0 : i32
    %c0_i32_0 = arith.constant 0 : i32
    %c0_i32_1 = arith.constant 0 : i32
    return %c0_i32, %c0_i32_0 : i32, i32
  }
  func.func @transform_8(%arg0: i32) -> (i32, i32) {
    %c0_i32 = arith.constant 0 : i32
    %c0_i32_0 = arith.constant 0 : i32
    %c0_i32_1 = arith.constant 0 : i32
    return %c0_i32, %c0_i32_0 : i32, i32
  }
  func.func @transform_9(%arg0: i32) -> (i32, i32) {
    %c0_i32 = arith.constant 0 : i32
    %c0_i32_0 = arith.constant 0 : i32
    return %arg0, %c0_i32 : i32, i32
  }
}

</mosaic_0001>

<llo_original>
// kernel: tpu_custom_call.1
$region0: #{tpu_custom_call.1}
  #allocation0 [shape = 'u32[]', space=smem, size = 0x4, offset = 0x4, fixed_abs, tag = 'smem constant byte address 0x4 - core index']
  #allocation1 [shape = 'u32[144,128]{1,0:T(1,128)}', space=vmem, size = 0x12000, scoped, tag = 'internal scratch']
  #allocation2 [shape = 'f32[1,1]{1,0:T(1,128)S(6)}', space=smem, size = 0x200, scoped, tag = 'scoped memory for tpu_custom_call.1']
  %s0 = inlined_call_operand.vmem [shape: f32[8,384], index: 0, kind: input, shape index: {}]
  %s1 = inlined_call_operand.vmem [shape: f32[8,39], index: 1, kind: input, shape index: {}]
  %s2 = inlined_call_operand.vmem [shape: f32[8,9], index: 2, kind: input, shape index: {}]
  %s3 = inlined_call_operand.vmem [shape: f32[384,64], index: 3, kind: input, shape index: {}]
  %s4 = inlined_call_operand.vmem [shape: f32[1,64], index: 4, kind: input, shape index: {}]
  %s5 = inlined_call_operand.vmem [shape: f32[64,32], index: 5, kind: input, shape index: {}]
  %s6 = inlined_call_operand.vmem [shape: f32[1,32], index: 6, kind: input, shape index: {}]
  %s7 = inlined_call_operand.vmem [shape: f32[1,32], index: 7, kind: input, shape index: {}]
  %s8 = inlined_call_operand.<no memory space> [shape: f32[1,1], index: 8, kind: input, shape index: {}]
  %s9 = inlined_call_operand.hbm [shape: f32[8,128], index: 9, kind: output, shape index: {}]
  %s10 = sld [smem:[#allocation0]]
  $region46: #{tpu_custom_call.1} parent=0
    _
  %s12 = ssub.s32 1, %s10
  %s13 = scalar_select 0, %s12, %s10
  %14 = sst [smem:[#allocation2]] %s8
  $region1: #{tpu_custom_call.1} parent=0
    #allocation3 [shape = 'u8[4096]{0}', space=vmem, size = 0x1000, scoped, tag = 'output window, operand 0, single buffered']
    #allocation4 [shape = 's32[1]{0}', space=sflag, size = 0x4, scoped, tag = 'scoped memory for tpu_custom_call.1']
    %15 = vsyncpa [#allocation4], 0
    // Predicated region
    $region2: #{tpu_custom_call.1} parent=1 // pred_check
      _
    $region3: #{tpu_custom_call.1} parent=1 // pred_check_branch
      %17 = sbr.rel (0) target = $region5
    $region4: #{tpu_custom_call.1} parent=1 // pred_region
      _
    $region5: #{tpu_custom_call.1} parent=1 // pred_fallthru
      _
    // Predicated region
    $region6: #{tpu_custom_call.1} parent=1 // pred_check
      _
    $region7: #{tpu_custom_call.1} parent=1 // pred_check_branch
      %19 = sbr.rel (0) target = $region9
    $region8: #{tpu_custom_call.1} parent=1 // pred_region
      _
    $region9: #{tpu_custom_call.1} parent=1 // pred_fallthru
      _
    // Predicated region
    $region10: #{tpu_custom_call.1} parent=1 // pred_check
      _
    $region11: #{tpu_custom_call.1} parent=1 // pred_check_branch
      %21 = sbr.rel (0) target = $region13
    $region12: #{tpu_custom_call.1} parent=1 // pred_region
      _
    $region13: #{tpu_custom_call.1} parent=1 // pred_fallthru
      _
    // Predicated region
    $region14: #{tpu_custom_call.1} parent=1 // pred_check
      _
    $region15: #{tpu_custom_call.1} parent=1 // pred_check_branch
      %23 = sbr.rel (0) target = $region17
    $region16: #{tpu_custom_call.1} parent=1 // pred_region
      _
    $region17: #{tpu_custom_call.1} parent=1 // pred_fallthru
      _
    // Predicated region
    $region18: #{tpu_custom_call.1} parent=1 // pred_check
      _
    $region19: #{tpu_custom_call.1} parent=1 // pred_check_branch
      %25 = sbr.rel (0) target = $region21
    $region20: #{tpu_custom_call.1} parent=1 // pred_region
      _
    $region21: #{tpu_custom_call.1} parent=1 // pred_fallthru
      _
    // Predicated region
    $region22: #{tpu_custom_call.1} parent=1 // pred_check
      _
    $region23: #{tpu_custom_call.1} parent=1 // pred_check_branch
      %27 = sbr.rel (0) target = $region25
    $region24: #{tpu_custom_call.1} parent=1 // pred_region
      _
    $region25: #{tpu_custom_call.1} parent=1 // pred_fallthru
      _
    // Predicated region
    $region26: #{tpu_custom_call.1} parent=1 // pred_check
      _
    $region27: #{tpu_custom_call.1} parent=1 // pred_check_branch
      %29 = sbr.rel (0) target = $region29
    $region28: #{tpu_custom_call.1} parent=1 // pred_region
      _
    $region29: #{tpu_custom_call.1} parent=1 // pred_fallthru
      _
    // Predicated region
    $region30: #{tpu_custom_call.1} parent=1 // pred_check
      _
    $region31: #{tpu_custom_call.1} parent=1 // pred_check_branch
      %31 = sbr.rel (0) target = $region33
    $region32: #{tpu_custom_call.1} parent=1 // pred_region
      _
    $region33: #{tpu_custom_call.1} parent=1 // pred_fallthru
      _
    // Predicated region
    $region34: #{tpu_custom_call.1} parent=1 // pred_check
      _
    $region35: #{tpu_custom_call.1} parent=1 // pred_check_branch
      %33 = sbr.rel (0) target = $region37
    $region36: #{tpu_custom_call.1} parent=1 // pred_region
      _
    $region37: #{tpu_custom_call.1} parent=1 // pred_fallthru
      _
    %v34 = vld [vmem:[%s0] sm:$0xff]
    %v35 = vld [vmem:[%s0 + $0x8] sm:$0xff]
    %v36 = vld [vmem:[%s0 + $0x10] sm:$0xff]
    %v37 = vld [vmem:[%s2] sm:$0xff]
    %v38 = vmul.f32 %v37, %v37
    %vm39 = vcmask 72704
    %v40 = vsel %vm39, %v38, 0.0
    %41 = vadd.xlane.f32.xlu0 %v40
    %v42 = vpop.xlane.xlu0 %41
    %v43 = vmul.f32 %v34, %v34
    %v44 = vmul.f32 %v35, %v35
    %v45 = vmul.f32 %v36, %v36
    %v46 = vadd.f32 %v43, %v44
    %v47 = vadd.f32 %v46, %v45
    %48 = vadd.xlane.f32.xlu0 %v47
    %v49 = vpop.xlane.xlu0 %48
    %v50 = vsub.f32 %v42, %v49
    %v51 = vmul.f32 %v50, 0.5
    %v52 = vld [vmem:[%s1] sm:$0xff]
    %vm53 = vcmask 318464
    %v54 = vsel %vm53, %v52, 0.0
    %55 = vadd.xlane.f32.xlu0 %v54
    %v56 = vpop.xlane.xlu0 %55
    %v57 = vld [vmem:[%s3] sm:$0xff]
    %v58 = vld [vmem:[%s3 + $0x8] sm:$0xff]
    %v59 = vld [vmem:[%s3 + $0x10] sm:$0xff]
    %v60 = vld [vmem:[%s3 + $0x18] sm:$0xff]
    %v61 = vld [vmem:[%s3 + $0x20] sm:$0xff]
    %v62 = vld [vmem:[%s3 + $0x28] sm:$0xff]
    %v63 = vld [vmem:[%s3 + $0x30] sm:$0xff]
    %v64 = vld [vmem:[%s3 + $0x38] sm:$0xff]
    %v65 = vld [vmem:[%s3 + $0x40] sm:$0xff]
    %v66 = vld [vmem:[%s3 + $0x48] sm:$0xff]
    %v67 = vld [vmem:[%s3 + $0x50] sm:$0xff]
    %v68 = vld [vmem:[%s3 + $0x58] sm:$0xff]
    %v69 = vld [vmem:[%s3 + $0x60] sm:$0xff]
    %v70 = vld [vmem:[%s3 + $0x68] sm:$0xff]
    %v71 = vld [vmem:[%s3 + $0x70] sm:$0xff]
    %v72 = vld [vmem:[%s3 + $0x78] sm:$0xff]
    %v73 = vld [vmem:[%s3 + $0x80] sm:$0xff]
    %v74 = vld [vmem:[%s3 + $0x88] sm:$0xff]
    %v75 = vld [vmem:[%s3 + $0x90] sm:$0xff]
    %v76 = vld [vmem:[%s3 + $0x98] sm:$0xff]
    %v77 = vld [vmem:[%s3 + $0xa0] sm:$0xff]
    %v78 = vld [vmem:[%s3 + $0xa8] sm:$0xff]
    %v79 = vld [vmem:[%s3 + $0xb0] sm:$0xff]
    %v80 = vld [vmem:[%s3 + $0xb8] sm:$0xff]
    %v81 = vld [vmem:[%s3 + $0xc0] sm:$0xff]
    %v82 = vld [vmem:[%s3 + $0xc8] sm:$0xff]
    %v83 = vld [vmem:[%s3 + $0xd0] sm:$0xff]
    %v84 = vld [vmem:[%s3 + $0xd8] sm:$0xff]
    %v85 = vld [vmem:[%s3 + $0xe0] sm:$0xff]
    %v86 = vld [vmem:[%s3 + $0xe8] sm:$0xff]
    %v87 = vld [vmem:[%s3 + $0xf0] sm:$0xff]
    %v88 = vld [vmem:[%s3 + $0xf8] sm:$0xff]
    %v89 = vld [vmem:[%s3 + $0x100] sm:$0xff]
    %v90 = vld [vmem:[%s3 + $0x108] sm:$0xff]
    %v91 = vld [vmem:[%s3 + $0x110] sm:$0xff]
    %v92 = vld [vmem:[%s3 + $0x118] sm:$0xff]
    %v93 = vld [vmem:[%s3 + $0x120] sm:$0xff]
    %v94 = vld [vmem:[%s3 + $0x128] sm:$0xff]
    %v95 = vld [vmem:[%s3 + $0x130] sm:$0xff]
    %v96 = vld [vmem:[%s3 + $0x138] sm:$0xff]
    %v97 = vld [vmem:[%s3 + $0x140] sm:$0xff]
    %v98 = vld [vmem:[%s3 + $0x148] sm:$0xff]
    %v99 = vld [vmem:[%s3 + $0x150] sm:$0xff]
    %v100 = vld [vmem:[%s3 + $0x158] sm:$0xff]
    %v101 = vld [vmem:[%s3 + $0x160] sm:$0xff]
    %v102 = vld [vmem:[%s3 + $0x168] sm:$0xff]
    %v103 = vld [vmem:[%s3 + $0x170] sm:$0xff]
    %v104 = vld [vmem:[%s3 + $0x178] sm:$0xff]
    %v105 = vld [vmem:[%s4] sm:$0x1]
    %v107 = vlaneseq
    %v108 = vshrl.u32 %v107, 7
    %v109 = vsub.s32 0, %v108
    %v110 = vrot.slane %v105, %v109
    %112 = vmatprep.subr.mxu0 0.0
    %113 = vmatpush1.msra.mxu0 %v57
    %114 = vmatprep.subr.mxu0 0.0
    %115 = vmatpush1.msra.mxu0 %v58
    %116 = vmatprep.subr.mxu0 0.0
    %117 = vmatpush1.msra.mxu0 %v59
    %118 = vmatprep.subr.mxu0 0.0
    %119 = vmatpush1.msra.mxu0 %v60
    %120 = vmatprep.subr.mxu0 0.0
    %121 = vmatpush1.msra.mxu0 %v61
    %122 = vmatprep.subr.mxu0 0.0
    %123 = vmatpush1.msra.mxu0 %v62
    %124 = vmatprep.subr.mxu0 0.0
    %125 = vmatpush1.msra.mxu0 %v63
    %126 = vmatprep.subr.mxu0 0.0
    %127 = vmatpush1.msra.mxu0 %v64
    %128 = vmatprep.subr.mxu0 0.0
    %129 = vmatpush1.msra.mxu0 %v65
    %130 = vmatprep.subr.mxu0 0.0
    %131 = vmatpush1.msra.mxu0 %v66
    %132 = vmatprep.subr.mxu0 0.0
    %133 = vmatpush1.msra.mxu0 %v67
    %134 = vmatprep.subr.mxu0 0.0
    %135 = vmatpush1.msra.mxu0 %v68
    %136 = vmatprep.subr.mxu0 0.0
    %137 = vmatpush1.msra.mxu0 %v69
    %138 = vmatprep.subr.mxu0 0.0
    %139 = vmatpush1.msra.mxu0 %v70
    %140 = vmatprep.subr.mxu0 0.0
    %141 = vmatpush1.msra.mxu0 %v71
    %142 = vmatprep.subr.mxu0 0.0
    %143 = vmatpush1.msra.mxu0 %v72
    %144 = vmatprep.subr.mxu0 0.0
    %145 = vmatpush1.msra.mxu0 %v73
    %146 = vmatprep.subr.mxu0 0.0
    %147 = vmatpush1.msra.mxu0 %v74
    %148 = vmatprep.subr.mxu0 0.0
    %149 = vmatpush1.msra.mxu0 %v75
    %150 = vmatprep.subr.mxu0 0.0
    %151 = vmatpush1.msra.mxu0 %v76
    %152 = vmatprep.subr.mxu0 0.0
    %153 = vmatpush1.msra.mxu0 %v77
    %154 = vmatprep.subr.mxu0 0.0
    %155 = vmatpush1.msra.mxu0 %v78
    %156 = vmatprep.subr.mxu0 0.0
    %157 = vmatpush1.msra.mxu0 %v79
    %158 = vmatprep.subr.mxu0 0.0
    %159 = vmatpush1.msra.mxu0 %v80
    %160 = vmatprep.subr.mxu0 0.0
    %161 = vmatpush1.msra.mxu0 %v81
    %162 = vmatprep.subr.mxu0 0.0
    %163 = vmatpush1.msra.mxu0 %v82
    %164 = vmatprep.subr.mxu0 0.0
    %165 = vmatpush1.msra.mxu0 %v83
    %166 = vmatprep.subr.mxu0 0.0
    %167 = vmatpush1.msra.mxu0 %v84
    %168 = vmatprep.subr.mxu0 0.0
    %169 = vmatpush1.msra.mxu0 %v85
    %170 = vmatprep.subr.mxu0 0.0
    %171 = vmatpush1.msra.mxu0 %v86
    %172 = vmatprep.subr.mxu0 0.0
    %173 = vmatpush1.msra.mxu0 %v87
    %174 = vmatprep.subr.mxu0 0.0
    %175 = vmatpush1.msra.mxu0 %v88
    %176 = vmatprep.mubr.f32.mxu0 %v35
    %177 = vmatmul.mubr.f32.gmra.mrb[0].mxu0 %v34
    %v178 = vpop.f32.mrb[0].mxu0
    %v179 = vadd.f32 %v110, %v178
    %v180 = vpop.f32.mrb[0].mxu0
    %181 = vdwg.mxu0
    %182 = vmatprep.subr.mxu0 0.0
    %183 = vmatpush1.msra.mxu0 %v89
    %184 = vmatprep.subr.mxu0 0.0
    %185 = vmatpush1.msra.mxu0 %v90
    %186 = vmatprep.subr.mxu0 0.0
    %187 = vmatpush1.msra.mxu0 %v91
    %188 = vmatprep.subr.mxu0 0.0
    %189 = vmatpush1.msra.mxu0 %v92
    %190 = vmatprep.subr.mxu0 0.0
    %191 = vmatpush1.msra.mxu0 %v93
    %192 = vmatprep.subr.mxu0 0.0
    %193 = vmatpush1.msra.mxu0 %v94
    %194 = vmatprep.subr.mxu0 0.0
    %195 = vmatpush1.msra.mxu0 %v95
    %196 = vmatprep.subr.mxu0 0.0
    %197 = vmatpush1.msra.mxu0 %v96
    %198 = vmatprep.subr.mxu0 0.0
    %199 = vmatpush1.msra.mxu0 %v97
    %200 = vmatprep.subr.mxu0 0.0
    %201 = vmatpush1.msra.mxu0 %v98
    %202 = vmatprep.subr.mxu0 0.0
    %203 = vmatpush1.msra.mxu0 %v99
    %204 = vmatprep.subr.mxu0 0.0
    %205 = vmatpush1.msra.mxu0 %v100
    %206 = vmatprep.subr.mxu0 0.0
    %207 = vmatpush1.msra.mxu0 %v101
    %208 = vmatprep.subr.mxu0 0.0
    %209 = vmatpush1.msra.mxu0 %v102
    %210 = vmatprep.subr.mxu0 0.0
    %211 = vmatpush1.msra.mxu0 %v103
    %212 = vmatprep.subr.mxu0 0.0
    %213 = vmatpush1.msra.mxu0 %v104
    %214 = vmatprep.subr.mxu0 0.0
    %215 = vmatpush1.msra.mxu0 0.0
    %216 = vmatprep.subr.mxu0 0.0
    %217 = vmatpush1.msra.mxu0 0.0
    %218 = vmatprep.subr.mxu0 0.0
    %219 = vmatpush1.msra.mxu0 0.0
    %220 = vmatprep.subr.mxu0 0.0
    %221 = vmatpush1.msra.mxu0 0.0
    %222 = vmatprep.subr.mxu0 0.0
    %223 = vmatpush1.msra.mxu0 0.0
    %224 = vmatprep.subr.mxu0 0.0
    %225 = vmatpush1.msra.mxu0 0.0
    %226 = vmatprep.subr.mxu0 0.0
    %227 = vmatpush1.msra.mxu0 0.0
    %228 = vmatprep.subr.mxu0 0.0
    %229 = vmatpush1.msra.mxu0 0.0
    %230 = vmatprep.subr.mxu0 0.0
    %231 = vmatpush1.msra.mxu0 0.0
    %232 = vmatprep.subr.mxu0 0.0
    %233 = vmatpush1.msra.mxu0 0.0
    %234 = vmatprep.subr.mxu0 0.0
    %235 = vmatpush1.msra.mxu0 0.0
    %236 = vmatprep.subr.mxu0 0.0
    %237 = vmatpush1.msra.mxu0 0.0
    %238 = vmatprep.subr.mxu0 0.0
    %239 = vmatpush1.msra.mxu0 0.0
    %240 = vmatprep.subr.mxu0 0.0
    %241 = vmatpush1.msra.mxu0 0.0
    %242 = vmatprep.subr.mxu0 0.0
    %243 = vmatpush1.msra.mxu0 0.0
    %244 = vmatprep.subr.mxu0 0.0
    %245 = vmatpush1.msra.mxu0 0.0
    %246 = vmatprep.mubr.f32.mxu0 0.0
    %247 = vmatmul.mubr.f32.gmra.mrb[0].mxu0 %v36
    %v248 = vpop.f32.mrb[0].mxu0
    %v249 = vadd.f32 %v179, %v248
    %v250 = vpop.f32.mrb[0].mxu0
    %251 = vdwg.mxu0
    %v252 = vmax.f32 %v249, 0.0
    %v253 = vld [vmem:[%s5] sm:$0xff]
    %v254 = vld [vmem:[%s5 + $0x8] sm:$0xff]
    %v255 = vld [vmem:[%s5 + $0x10] sm:$0xff]
    %v256 = vld [vmem:[%s5 + $0x18] sm:$0xff]
    %v257 = vld [vmem:[%s5 + $0x20] sm:$0xff]
    %v258 = vld [vmem:[%s5 + $0x28] sm:$0xff]
    %v259 = vld [vmem:[%s5 + $0x30] sm:$0xff]
    %v260 = vld [vmem:[%s5 + $0x38] sm:$0xff]
    %v261 = vld [vmem:[%s6] sm:$0x1]
    %v263 = vlaneseq
    %v264 = vshrl.u32 %v263, 7
    %v265 = vsub.s32 0, %v264
    %v266 = vrot.slane %v261, %v265
    %vm268 = vcmask 523264
    %v270 = vsel %vm268, %v252, 0
    %272 = vmatprep.subr.mxu0 0.0
    %273 = vmatpush1.msra.mxu0 %v253
    %274 = vmatprep.subr.mxu0 0.0
    %275 = vmatpush1.msra.mxu0 %v254
    %276 = vmatprep.subr.mxu0 0.0
    %277 = vmatpush1.msra.mxu0 %v255
    %278 = vmatprep.subr.mxu0 0.0
    %279 = vmatpush1.msra.mxu0 %v256
    %280 = vmatprep.subr.mxu0 0.0
    %281 = vmatpush1.msra.mxu0 %v257
    %282 = vmatprep.subr.mxu0 0.0
    %283 = vmatpush1.msra.mxu0 %v258
    %284 = vmatprep.subr.mxu0 0.0
    %285 = vmatpush1.msra.mxu0 %v259
    %286 = vmatprep.subr.mxu0 0.0
    %287 = vmatpush1.msra.mxu0 %v260
    %288 = vmatprep.subr.mxu0 0.0
    %289 = vmatpush1.msra.mxu0 0.0
    %290 = vmatprep.subr.mxu0 0.0
    %291 = vmatpush1.msra.mxu0 0.0
    %292 = vmatprep.subr.mxu0 0.0
    %293 = vmatpush1.msra.mxu0 0.0
    %294 = vmatprep.subr.mxu0 0.0
    %295 = vmatpush1.msra.mxu0 0.0
    %296 = vmatprep.subr.mxu0 0.0
    %297 = vmatpush1.msra.mxu0 0.0
    %298 = vmatprep.subr.mxu0 0.0
    %299 = vmatpush1.msra.mxu0 0.0
    %300 = vmatprep.subr.mxu0 0.0
    %301 = vmatpush1.msra.mxu0 0.0
    %302 = vmatprep.subr.mxu0 0.0
    %303 = vmatpush1.msra.mxu0 0.0
    %304 = vmatprep.subr.mxu0 0.0
    %305 = vmatpush1.msra.mxu0 0.0
    %306 = vmatprep.subr.mxu0 0.0
    %307 = vmatpush1.msra.mxu0 0.0
    %308 = vmatprep.subr.mxu0 0.0
    %309 = vmatpush1.msra.mxu0 0.0
    %310 = vmatprep.subr.mxu0 0.0
    %311 = vmatpush1.msra.mxu0 0.0
    %312 = vmatprep.subr.mxu0 0.0
    %313 = vmatpush1.msra.mxu0 0.0
    %314 = vmatprep.subr.mxu0 0.0
    %315 = vmatpush1.msra.mxu0 0.0
    %316 = vmatprep.subr.mxu0 0.0
    %317 = vmatpush1.msra.mxu0 0.0
    %318 = vmatprep.subr.mxu0 0.0
    %319 = vmatpush1.msra.mxu0 0.0
    %320 = vmatprep.subr.mxu0 0.0
    %321 = vmatpush1.msra.mxu0 0.0
    %322 = vmatprep.subr.mxu0 0.0
    %323 = vmatpush1.msra.mxu0 0.0
    %324 = vmatprep.subr.mxu0 0.0
    %325 = vmatpush1.msra.mxu0 0.0
    %326 = vmatprep.subr.mxu0 0.0
    %327 = vmatpush1.msra.mxu0 0.0
    %328 = vmatprep.subr.mxu0 0.0
    %329 = vmatpush1.msra.mxu0 0.0
    %330 = vmatprep.subr.mxu0 0.0
    %331 = vmatpush1.msra.mxu0 0.0
    %332 = vmatprep.subr.mxu0 0.0
    %333 = vmatpush1.msra.mxu0 0.0
    %334 = vmatprep.subr.mxu0 0.0
    %335 = vmatpush1.msra.mxu0 0.0
    %336 = vmatprep.mubr.f32.mxu0 0.0
    %337 = vmatmul.mubr.f32.gmra.mrb[0].mxu0 %v270
    %v338 = vpop.f32.mrb[0].mxu0
    %v339 = vadd.f32 %v266, %v338
    %v340 = vpop.f32.mrb[0].mxu0
    %341 = vdwg.mxu0
    %v342 = vmax.f32 %v339, 0.0
    %v343 = vld [vmem:[%s7] sm:$0x1]
    %v345 = vlaneseq
    %v346 = vshrl.u32 %v345, 7
    %v347 = vsub.s32 0, %v346
    %v348 = vrot.slane %v343, %v347
    %v350 = vmul.f32 %v342, %v348
    %vm351 = vcmask 261120
    %v352 = vsel %vm351, %v350, 0.0
    %353 = vadd.xlane.f32.xlu0 %v352
    %v354 = vpop.xlane.xlu0 %353
    %s355 = sld [smem:[#allocation2]]
    %v356 = vstv %s355
    %v357 = vadd.f32 %v354, %v356
    %v358 = vadd.f32 %v56, %v51
    %v359 = vadd.f32 %v358, %v357
    %v360 = vsub.f32 0.0, %v359
    %v361 = vmul.f32 %v360, 1.442695
    %v362 = vpow.pop %v361
    %v363 = vadd.f32 %v362, 1.0
    %v364 = vrcp.pop %v363
    %v365 = vmul.f32 1.0, %v364
    %366 = vst [vmem:[#allocation3] sm:$0xff] %v365
    // Predicated region
    $region38: #{tpu_custom_call.1} parent=1 // pred_check
      _
    $region39: #{tpu_custom_call.1} parent=1 // pred_check_branch
      %368 = sbr.rel (0) target = $region41
    $region40: #{tpu_custom_call.1} parent=1 // pred_region
      %s370 = ssub.s32 128, 128
      %371 = vsyncadd [#allocation4], %s370
      %s373 = sshll.u32 [#allocation3], 4
      %s374 = int_to_ptr.vmem [resolvable:$true] %s373
      %376 = dma.vmem_to_hbm [thread:$0]  %s374, 128, %s9, [#allocation4]
    $region41: #{tpu_custom_call.1} parent=1 // pred_fallthru
      _
    // Predicated region
    $region42: #{tpu_custom_call.1} parent=1 // pred_check
      _
    $region43: #{tpu_custom_call.1} parent=1 // pred_check_branch
      %378 = sbr.rel (0) target = $region45
    $region44: #{tpu_custom_call.1} parent=1 // pred_region
      %379 = dma.done [#allocation4], 128
    $region45: #{tpu_custom_call.1} parent=1 // pred_fallthru
      _
    %380 = vsyncpa [#allocation4], 1

</llo_original>
